<compile_context>
chip_gen: v7x
topology: tpu7x:2x2x1
jax: 0.10.0
libtpu: 0.0.40
codegen_flags: <defaults>
</compile_context>

<pallas_src>
import jax
import jax.numpy as jnp
from jax.experimental import pallas as pl
from jax.experimental.pallas import tpu as pltpu


def _norm_kernel(mean_ref, inv_std_ref, x_ref, o_ref):
    # mean_ref / inv_std_ref: (R_BLK, 1) f32 columns -> broadcast over lanes.
    # x_ref / o_ref:          (R_BLK, L_BLK)
    x = x_ref[...].astype(jnp.float32)
    o_ref[...] = ((x - mean_ref[...]) * inv_std_ref[...]).astype(o_ref.dtype)


def _tpu_budgets():
    """Return (target block bytes, scoped vmem_limit_bytes), generation-aware."""
    try:
        vmem_phys = int(pltpu.get_tpu_info().vmem_capacity_bytes)
    except Exception:
        vmem_phys = 64 * 1024 * 1024  # conservative (v7x-class floor)

    if vmem_phys <= 64 * 1024 * 1024:
        # v7x-class (64 MiB VMEM, ~3.2 TB/s HBM per TC): big blocks amortize
        # the ~0.35 us per-grid-step cost; keep >=16 MiB headroom under the
        # physical cap and >=5x the block size under the scoped limit.
        vmem_limit = vmem_phys - 16 * 1024 * 1024
        target = min(8 * 1024 * 1024, vmem_limit // 5)
        return target, vmem_limit

    # v5e/v6e-class (128 MiB VMEM): 8 MiB blocks bring per-step overhead to a
    # few percent on v6e and are harmless on v5e; plenty of VMEM headroom.
    return 8 * 1024 * 1024, 64 * 1024 * 1024


def _choose_blocks(R, L, itemsize, target_bytes):
    """Pick (r_blk, l_blk): lane-dense last dim, ~target_bytes per block."""
    # Rows pack along sublanes for sub-32-bit dtypes: 8 f32 / 16 bf16 / 32 int8.
    row_mult = 8 * max(1, 4 // itemsize)

    # Lane (last) dim: prefer the full extent (one contiguous HBM run per
    # block, unmasked lane-dense stores); only split L when even a
    # row_mult-row slab of full L would blow the budget.
    max_l = max(128, (target_bytes // (row_mult * itemsize)) // 128 * 128)
    l_blk = L if L <= max_l else max_l

    # Row (sublane) dim: fill the remaining budget, rounded to row_mult.
    rows = (target_bytes // max(1, l_blk * itemsize)) // row_mult * row_mult
    rows = max(row_mult, rows)
    r_blk = R if R <= rows else rows

    # v7x has 2 TensorCores sharing the chip: a (1, 1) grid leaves one idle.
    # If everything fits in a single block and the array is big enough to be
    # worth splitting, halve the row dim (keeps full-L contiguous DMA runs),
    # otherwise halve the lane dim.
    if r_blk >= R and l_blk >= L and R * L * itemsize >= (1 << 20):
        if R >= 2 * row_mult:
            half = (R + 1) // 2
            r_blk = -(-half // row_mult) * row_mult
        elif L >= 256:
            half = (L + 1) // 2
            l_blk = -(-half // 128) * 128

    return r_blk, l_blk


def normalization(img: jax.Array, mean: jax.Array, std: jax.Array,
                  *, force_pallas: bool = False,
                  donate_input: bool = False) -> jax.Array:
    """(img - mean[:, None, None]) / std[:, None, None] for NCHW img."""
    N, C, H, W = img.shape
    assert mean.shape == (C,) and std.shape == (C,)

    R, L = N * C, H * W
    itemsize = jnp.dtype(img.dtype).itemsize

    # Tiny-input fast path: fixed pallas_call / grid-step overhead dominates
    # below a few hundred KiB; plain jnp broadcasting is strictly faster.
    if not force_pallas and R * L * itemsize < 256 * 1024:
        m = mean.astype(jnp.float32)[None, :, None, None]
        s = std.astype(jnp.float32)[None, :, None, None]
        return ((img.astype(jnp.float32) - m) / s).astype(img.dtype)

    x2 = img.reshape(R, L)

    # Per-row (per (n, c)) mean and reciprocal std, computed once in f32 in
    # the wrapper (tiny (N*C,) ops) so the kernel only does sub + mul on the
    # VPU and bf16/f16 images don't lose precision in the constants.
    mean_rows = jnp.tile(mean.astype(jnp.float32), N).reshape(R, 1)
    inv_std_rows = jnp.tile(1.0 / std.astype(jnp.float32), N).reshape(R, 1)

    target_bytes, vmem_limit = _tpu_budgets()
    r_blk, l_blk = _choose_blocks(R, L, itemsize, target_bytes)
    grid = (pl.cdiv(R, r_blk), pl.cdiv(L, l_blk))

    out2 = pl.pallas_call(
        _norm_kernel,
        out_shape=jax.ShapeDtypeStruct((R, L), img.dtype),
        grid_spec=pltpu.PrefetchScalarGridSpec(
            num_scalar_prefetch=0,
            grid=grid,
            in_specs=[
                pl.BlockSpec((r_blk, 1), lambda i, j: (i, 0)),      # mean col
                pl.BlockSpec((r_blk, 1), lambda i, j: (i, 0)),      # 1/std col
                pl.BlockSpec((r_blk, l_blk), lambda i, j: (i, j)),  # img slab
            ],
            out_specs=pl.BlockSpec((r_blk, l_blk), lambda i, j: (i, j)),
        ),
        compiler_params=pltpu.CompilerParams(
            dimension_semantics=("parallel", "parallel"),
            vmem_limit_bytes=int(vmem_limit),
        ),
        # If the caller donates img (it is dead afterwards), reuse its HBM
        # buffer for the output and drop one full-image allocation.
        input_output_aliases=({2: 0} if donate_input else {}),
    )(mean_rows, inv_std_rows, x2)

    return out2.reshape(N, C, H, W)


if __name__ == "__main__":
    N, C, H, W = 2, 4, 16, 16

    key = jax.random.PRNGKey(0)
    img = jax.random.uniform(key, (N, C, H, W), dtype=jnp.float32)

    # Deterministic per-channel constants (ImageNet-style, padded to C=4).
    mean = jnp.array([0.485, 0.456, 0.406, 0.500], dtype=jnp.float32)
    std = jnp.array([0.229, 0.224, 0.225, 0.250], dtype=jnp.float32)

    # force_pallas so the Pallas kernel (not the tiny-input jnp fallback) is
    # exercised at this small demo size.
    out = jax.block_until_ready(
        normalization(img, mean, std, force_pallas=True))

    # Reference check against plain JAX broadcasting (PyTorch semantics).
    ref = (img - mean[None, :, None, None]) / std[None, :, None, None]
    assert out.shape == (N, C, H, W)
    assert jnp.allclose(out, ref, rtol=1e-5, atol=1e-6)

    print("KERNEL_OK")
</pallas_src>

<mosaic_0001>
module attributes {stable_mosaic.version = 11 : i64} {
  func.func @_norm_kernel(%arg0: i32, %arg1: i32, %arg2: memref<8x1xf32, #tpu.memory_space<vmem>>, %arg3: memref<8x1xf32, #tpu.memory_space<vmem>>, %arg4: memref<8x256xf32, #tpu.memory_space<vmem>>, %arg5: memref<8x256xf32, #tpu.memory_space<vmem>>) attributes {dimension_semantics = [#tpu.dimension_semantics<parallel>, #tpu.dimension_semantics<parallel>], iteration_bounds = array<i64: 1, 1>, scalar_prefetch = 0 : i64, scratch_operands = 0 : i64, tpu.core_type = #tpu.core_type<tc>, window_params = [{transform_indices = @transform_0, window_bounds = array<i64: 8, 1>}, {transform_indices = @transform_1, window_bounds = array<i64: 8, 1>}, {transform_indices = @transform_2, window_bounds = array<i64: 8, 256>}, {transform_indices = @transform_3, window_bounds = array<i64: 8, 256>}]} {
    %c0 = arith.constant 0 : index
    %c0_0 = arith.constant 0 : index
    %0 = vector.load %arg4[%c0, %c0_0] : memref<8x256xf32, #tpu.memory_space<vmem>>, vector<8x256xf32>
    %c0_1 = arith.constant 0 : index
    %c0_2 = arith.constant 0 : index
    %1 = vector.load %arg2[%c0_1, %c0_2] : memref<8x1xf32, #tpu.memory_space<vmem>>, vector<8x1xf32>
    %2 = vector.broadcast %1 : vector<8x1xf32> to vector<8x256xf32>
    %3 = arith.subf %0, %2 : vector<8x256xf32>
    %c0_3 = arith.constant 0 : index
    %c0_4 = arith.constant 0 : index
    %4 = vector.load %arg3[%c0_3, %c0_4] : memref<8x1xf32, #tpu.memory_space<vmem>>, vector<8x1xf32>
    %5 = vector.broadcast %4 : vector<8x1xf32> to vector<8x256xf32>
    %6 = arith.mulf %3, %5 : vector<8x256xf32>
    %c0_5 = arith.constant 0 : index
    %c0_6 = arith.constant 0 : index
    %7 = vector.load %arg5[%c0_5, %c0_6] : memref<8x256xf32, #tpu.memory_space<vmem>>, vector<8x256xf32>
    tpu.vector_store %arg5[%c0_5, %c0_6], %6 {strides = array<i32>} : memref<8x256xf32, #tpu.memory_space<vmem>>, vector<8x256xf32>,
    return
  }
  func.func @transform_0(%arg0: i32, %arg1: i32) -> (i32, i32) {
    %c0_i32 = arith.constant 0 : i32
    %c0_i32_0 = arith.constant 0 : i32
    return %arg0, %c0_i32 : i32, i32
  }
  func.func @transform_1(%arg0: i32, %arg1: i32) -> (i32, i32) {
    %c0_i32 = arith.constant 0 : i32
    %c0_i32_0 = arith.constant 0 : i32
    return %arg0, %c0_i32 : i32, i32
  }
  func.func @transform_2(%arg0: i32, %arg1: i32) -> (i32, i32) {
    %c0_i32 = arith.constant 0 : i32
    return %arg0, %arg1 : i32, i32
  }
  func.func @transform_3(%arg0: i32, %arg1: i32) -> (i32, i32) {
    %c0_i32 = arith.constant 0 : i32
    return %arg0, %arg1 : i32, i32
  }
}

</mosaic_0001>

<llo_original>
// kernel: tpu_custom_call.1
$region0: #{tpu_custom_call.1}
  #allocation0 [shape = 'u32[]', space=smem, size = 0x4, offset = 0x4, fixed_abs, tag = 'smem constant byte address 0x4 - core index']
  #allocation1 [shape = 'u32[144,128]{1,0:T(1,128)}', space=vmem, size = 0x12000, scoped, tag = 'internal scratch']
  %s0 = inlined_call_operand.vmem [shape: f32[8,1], index: 0, kind: input, shape index: {}]
  %s1 = inlined_call_operand.vmem [shape: f32[8,1], index: 1, kind: input, shape index: {}]
  %s2 = inlined_call_operand.vmem [shape: f32[8,256], index: 2, kind: input, shape index: {}]
  %s3 = inlined_call_operand.hbm [shape: f32[8,256], index: 3, kind: output, shape index: {}]
  %s4 = sld [smem:[#allocation0]]
  $region22: #{tpu_custom_call.1} parent=0
    _
  %s6 = ssub.s32 1, %s4
  %s7 = scalar_select 0, %s6, %s4
  $region1: #{tpu_custom_call.1} parent=0
    #allocation2 [shape = 'u8[8192]{0}', space=vmem, size = 0x2000, scoped, tag = 'output window, operand 0, single buffered']
    #allocation3 [shape = 's32[1]{0}', space=sflag, size = 0x4, scoped, tag = 'scoped memory for tpu_custom_call.1']
    %8 = vsyncpa [#allocation3], 0
    // Predicated region
    $region2: #{tpu_custom_call.1} parent=1 // pred_check
      _
    $region3: #{tpu_custom_call.1} parent=1 // pred_check_branch
      %10 = sbr.rel (0) target = $region5
    $region4: #{tpu_custom_call.1} parent=1 // pred_region
      _
    $region5: #{tpu_custom_call.1} parent=1 // pred_fallthru
      _
    // Predicated region
    $region6: #{tpu_custom_call.1} parent=1 // pred_check
      _
    $region7: #{tpu_custom_call.1} parent=1 // pred_check_branch
      %12 = sbr.rel (0) target = $region9
    $region8: #{tpu_custom_call.1} parent=1 // pred_region
      _
    $region9: #{tpu_custom_call.1} parent=1 // pred_fallthru
      _
    // Predicated region
    $region10: #{tpu_custom_call.1} parent=1 // pred_check
      _
    $region11: #{tpu_custom_call.1} parent=1 // pred_check_branch
      %14 = sbr.rel (0) target = $region13
    $region12: #{tpu_custom_call.1} parent=1 // pred_region
      _
    $region13: #{tpu_custom_call.1} parent=1 // pred_fallthru
      _
    %v15 = vld [vmem:[%s2] sm:$0xff]
    %v16 = vld [vmem:[%s2 + $0x8] sm:$0xff]
    %v17 = vld [vmem:[%s0] sm:$0xff]
    %19 = vset.pattern.permute.xlu0 0
    %20 = vperm.xlu0 %19, %v17
    %v21 = vpop.permute.xlu0 %20
    %v23 = vsub.f32 %v15, %v21
    %v24 = vsub.f32 %v16, %v21
    %v25 = vld [vmem:[%s1] sm:$0xff]
    %27 = vset.pattern.permute.xlu0 0
    %28 = vperm.xlu0 %27, %v25
    %v29 = vpop.permute.xlu0 %28
    %v31 = vmul.f32 %v23, %v29
    %v32 = vmul.f32 %v24, %v29
    %33 = vst [vmem:[#allocation2] sm:$0xff] %v31
    %34 = vst [vmem:[#allocation2 + $0x8] sm:$0xff] %v32
    // Predicated region
    $region14: #{tpu_custom_call.1} parent=1 // pred_check
      _
    $region15: #{tpu_custom_call.1} parent=1 // pred_check_branch
      %36 = sbr.rel (0) target = $region17
    $region16: #{tpu_custom_call.1} parent=1 // pred_region
      %s38 = ssub.s32 256, 256
      %39 = vsyncadd [#allocation3], %s38
      %s41 = sshll.u32 [#allocation2], 4
      %s42 = int_to_ptr.vmem [resolvable:$true] %s41
      %44 = dma.vmem_to_hbm [thread:$0]  %s42, 256, %s3, [#allocation3]
    $region17: #{tpu_custom_call.1} parent=1 // pred_fallthru
      _
    // Predicated region
    $region18: #{tpu_custom_call.1} parent=1 // pred_check
      _
    $region19: #{tpu_custom_call.1} parent=1 // pred_check_branch
      %46 = sbr.rel (0) target = $region21
    $region20: #{tpu_custom_call.1} parent=1 // pred_region
      %47 = dma.done [#allocation3], 256
    $region21: #{tpu_custom_call.1} parent=1 // pred_fallthru
      _
    %48 = vsyncpa [#allocation3], 1

</llo_original>
